<compile_context>
chip_gen: v7x
topology: tpu7x:2x2x1
jax: 0.10.0
libtpu: 0.0.40
codegen_flags: <defaults>
</compile_context>

<pallas_src>
import functools

import jax
import jax.numpy as jnp
from jax.experimental import pallas as pl
from jax.experimental.pallas import tpu as pltpu

LANE = 128


def _round_up(n, m):
    return ((n + m - 1) // m) * m


def _cdiv(a, b):
    return -(-a // b)


# ---------------------------------------------------------------------------
# Kernel
# ---------------------------------------------------------------------------
def _qnet_kernel(depth, x_ref, *refs):
    """Fused MLP: `depth` x (Linear -> ReLU) + final Linear.

    refs layout: w0, w1, ..., w_depth, bias_pack, out_ref.
      w_i       : (in_pad_i, out_pad_i) compute dtype (f32 by default)
      bias_pack : (depth+1, max_out_pad) f32 -- one row per layer
      out_ref   : (tile_batch, act_pad) f32
    All feature dims are zero-padded to 128-lane multiples, so padded
    neurons stay exactly 0 through bias-add and ReLU.
    """
    out_ref = refs[-1]
    bias_ref = refs[-2]
    w_refs = refs[:-2]

    biases = bias_ref[...]                 # (depth+1, max_out_pad) f32
    h = x_ref[...]                         # (tb, state_pad)
    for layer in range(depth + 1):
        w = w_refs[layer][...]
        out_p = w.shape[1]
        b = biases[layer:layer + 1, :out_p]            # (1, out_p) f32
        acc = jnp.dot(h, w, preferred_element_type=jnp.float32) + b
        if layer < depth:
            h = jnp.maximum(acc, 0.0).astype(w.dtype)
        else:
            out_ref[...] = acc.astype(out_ref.dtype)


# ---------------------------------------------------------------------------
# One-time parameter preparation (hoisted out of the hot path)
# ---------------------------------------------------------------------------
def prepare_qnetwork_params(params, depth=None, dtype=jnp.float32):
    """Pad weights/biases to 128-lane multiples and cast ONCE, outside the
    per-call forward path.

    params: flat list [w0, b0, ..., w_depth, b_depth]; w_i is (in, out)
            (transposed vs nn.Linear's (out, in)), b_i is (out,) or (1, out).
    Returns (weights_tuple, bias_pack) to pass to qnetwork_forward.
    """
    if depth is None:
        depth = len(params) // 2 - 1
    weights = []
    out_pads = []
    for layer in range(depth + 1):
        w = jnp.asarray(params[2 * layer])
        in_d, out_d = w.shape
        in_p, out_p = _round_up(in_d, LANE), _round_up(out_d, LANE)
        weights.append(
            jnp.pad(w.astype(dtype), ((0, in_p - in_d), (0, out_p - out_d))))
        out_pads.append(out_p)
    max_out_p = max(out_pads)

    rows = []
    for layer in range(depth + 1):
        b = jnp.asarray(params[2 * layer + 1]).reshape(-1).astype(jnp.float32)
        rows.append(jnp.pad(b, (0, max_out_p - b.shape[0])))
    bias_pack = jnp.stack(rows, axis=0)                # (depth+1, max_out_p)
    return tuple(weights), bias_pack


# ---------------------------------------------------------------------------
# Hardware / feature probes (cached)
# ---------------------------------------------------------------------------
@functools.lru_cache(maxsize=None)
def _vmem_capacity_bytes():
    try:
        return int(pltpu.get_tpu_info().vmem_capacity_bytes)
    except Exception:
        return 64 * 1024 * 1024      # conservative: v7x per-TensorCore VMEM


@functools.lru_cache(maxsize=None)
def _single_buffer_supported():
    """Probe (once) whether resident operands can be single-buffered via
    pipeline_mode=pl.Buffered(1); otherwise fall back to default buffering."""
    try:
        spec = pl.BlockSpec((8, 128), lambda i: (0, 0),
                            pipeline_mode=pl.Buffered(1))

        def _probe(a_ref, o_ref):
            o_ref[...] = a_ref[...]

        fn = pl.pallas_call(
            _probe,
            grid=(2,),
            in_specs=[spec],
            out_specs=pl.BlockSpec((8, 128), lambda i: (i, 0)),
            out_shape=jax.ShapeDtypeStruct((16, 128), jnp.float32),
        )
        jax.jit(fn).lower(jax.ShapeDtypeStruct((8, 128), jnp.float32)).compile()
        return True
    except Exception:
        return False


# ---------------------------------------------------------------------------
# Batch tiling
# ---------------------------------------------------------------------------
def _batch_tiling(batch):
    """Pick (tile_rows, padded_batch).

    Tiles are multiples of 16 (sublane-friendly for f32 and bf16), at most
    512 rows (amortizes ~0.35us/step pipeline overhead while keeping the
    per-step VMEM footprint tiny), and the grid gets >= 2 steps whenever the
    batch allows, so v7x's two TensorCores both get work. Padding waste stays
    small (<= 15 rows per tile)."""
    bp16 = _round_up(batch, 16)
    if bp16 <= 16:
        return bp16, bp16
    nsteps = max(2, _cdiv(bp16, 512))
    tb = _round_up(_cdiv(bp16, nsteps), 16)
    return tb, tb * nsteps


# ---------------------------------------------------------------------------
# Forward
# ---------------------------------------------------------------------------
@functools.partial(jax.jit, static_argnums=(3, 4))
def _qnetwork_forward_impl(x, weights, bias_pack, action_dim, single_buffer):
    batch, state_dim = x.shape
    depth = len(weights) - 1
    comp_dtype = weights[0].dtype
    state_p = weights[0].shape[0]
    act_p = weights[-1].shape[1]

    tb, batch_p = _batch_tiling(batch)
    x_p = jnp.pad(x.astype(comp_dtype),
                  ((0, batch_p - batch), (0, state_p - state_dim)))

    grid = (batch_p // tb,)

    def resident_spec(shape):
        index_map = lambda i: (0,) * len(shape)
        if single_buffer:
            return pl.BlockSpec(shape, index_map,
                                pipeline_mode=pl.Buffered(1))
        return pl.BlockSpec(shape, index_map)

    in_specs = [pl.BlockSpec((tb, state_p), lambda i: (i, 0))]
    in_specs += [resident_spec(w.shape) for w in weights]
    in_specs.append(resident_spec(bias_pack.shape))
    out_spec = pl.BlockSpec((tb, act_p), lambda i: (i, 0))

    # Cost estimate for XLA scheduling around the custom call.
    flops = sum(2 * batch_p * w.shape[0] * w.shape[1] for w in weights)
    param_bytes = (sum(int(w.size) * w.dtype.itemsize for w in weights)
                   + int(bias_pack.size) * 4)
    bytes_accessed = (int(x_p.size) * x_p.dtype.itemsize
                      + param_bytes + batch_p * act_p * 4)
    cost = pl.CostEstimate(flops=int(flops), transcendentals=0,
                           bytes_accessed=int(bytes_accessed))

    # VMEM budget: resident params (x1 if single-buffered, else x2) plus
    # double-buffered x / out tiles, clamped to the chip's real capacity.
    buf = 1 if single_buffer else 2
    tile_bytes = 2 * (tb * state_p * x_p.dtype.itemsize + tb * act_p * 4)
    vmem_needed = buf * param_bytes + tile_bytes + (4 << 20)
    vmem_limit = int(min(max(vmem_needed, 32 << 20),
                         _vmem_capacity_bytes() - (8 << 20)))

    out_padded = pl.pallas_call(
        functools.partial(_qnet_kernel, depth),
        grid=grid,
        in_specs=in_specs,
        out_specs=out_spec,
        out_shape=jax.ShapeDtypeStruct((batch_p, act_p), jnp.float32),
        compiler_params=pltpu.CompilerParams(
            dimension_semantics=("parallel",),
            vmem_limit_bytes=vmem_limit,
        ),
        cost_estimate=cost,
    )(x_p, *weights, bias_pack)

    return out_padded[:batch, :action_dim]


def qnetwork_forward(x, weights, bias_pack, action_dim):
    """QNetwork forward. `weights`/`bias_pack` come from
    prepare_qnetwork_params (padded once, outside the hot path)."""
    return _qnetwork_forward_impl(x, tuple(weights), bias_pack,
                                  int(action_dim),
                                  bool(_single_buffer_supported()))


# ---------------------------------------------------------------------------
# Test harness
# ---------------------------------------------------------------------------
def init_params(key, state_dim, action_dim, hidden_dim, depth):
    """Deterministic init matching nn.Linear shapes (stored transposed)."""
    dims = [state_dim] + [hidden_dim] * depth + [action_dim]
    params = []
    for i in range(len(dims) - 1):
        key, kw, kb = jax.random.split(key, 3)
        bound = 1.0 / jnp.sqrt(jnp.float32(dims[i]))
        w = jax.random.uniform(kw, (dims[i], dims[i + 1]), jnp.float32,
                               -bound, bound)
        b = jax.random.uniform(kb, (1, dims[i + 1]), jnp.float32,
                               -bound, bound)
        params.extend([w, b])
    return params


def reference_forward(x, params, depth):
    h = x
    for layer in range(depth):
        h = jnp.maximum(h @ params[2 * layer] + params[2 * layer + 1], 0.0)
    return h @ params[2 * depth] + params[2 * depth + 1]


if __name__ == "__main__":
    state_dim, action_dim, hidden_dim, depth = 8, 4, 32, 2
    batch = 2

    key = jax.random.PRNGKey(0)
    key, kx, kx2 = jax.random.split(key, 3)
    x = jax.random.normal(kx, (batch, state_dim), jnp.float32)
    raw_params = init_params(key, state_dim, action_dim, hidden_dim, depth)

    # One-time padding/cast (hoisted out of the per-call forward path).
    weights, bias_pack = prepare_qnetwork_params(raw_params, depth)

    # Small batch (acting): single tile.
    out = qnetwork_forward(x, weights, bias_pack, action_dim)
    out = jax.block_until_ready(out)
    ref = reference_forward(x, raw_params, depth)
    assert out.shape == (batch, action_dim)
    assert jnp.allclose(out, ref, atol=2e-2, rtol=2e-2), "mismatch (batch=2)"

    # Larger batch (training minibatch): exercises the multi-tile parallel grid.
    batch2 = 40
    x2 = jax.random.normal(kx2, (batch2, state_dim), jnp.float32)
    out2 = jax.block_until_ready(
        qnetwork_forward(x2, weights, bias_pack, action_dim))
    ref2 = reference_forward(x2, raw_params, depth)
    assert out2.shape == (batch2, action_dim)
    assert jnp.allclose(out2, ref2, atol=2e-2, rtol=2e-2), "mismatch (batch=40)"

    print("KERNEL_OK")
</pallas_src>

<mosaic_0001>
module attributes {stable_mosaic.version = 11 : i64} {
  func.func @_qnet_kernel(%arg0: i32, %arg1: memref<16x128xf32, #tpu.memory_space<vmem>>, %arg2: memref<128x128xf32, #tpu.memory_space<vmem>>, %arg3: memref<128x128xf32, #tpu.memory_space<vmem>>, %arg4: memref<128x128xf32, #tpu.memory_space<vmem>>, %arg5: memref<3x128xf32, #tpu.memory_space<vmem>>, %arg6: memref<16x128xf32, #tpu.memory_space<vmem>>) attributes {dimension_semantics = [#tpu.dimension_semantics<parallel>], iteration_bounds = array<i64: 1>, scalar_prefetch = 0 : i64, scratch_operands = 0 : i64, tpu.core_type = #tpu.core_type<tc>, window_params = [{transform_indices = @transform_0, window_bounds = array<i64: 16, 128>}, {pipeline_mode = #tpu.pipeline_mode<synchronous>, transform_indices = @transform_1, window_bounds = array<i64: 128, 128>}, {pipeline_mode = #tpu.pipeline_mode<synchronous>, transform_indices = @transform_2, window_bounds = array<i64: 128, 128>}, {pipeline_mode = #tpu.pipeline_mode<synchronous>, transform_indices = @transform_3, window_bounds = array<i64: 128, 128>}, {pipeline_mode = #tpu.pipeline_mode<synchronous>, transform_indices = @transform_4, window_bounds = array<i64: 3, 128>}, {transform_indices = @transform_5, window_bounds = array<i64: 16, 128>}]} {
    %c0 = arith.constant 0 : index
    %c0_0 = arith.constant 0 : index
    %0 = vector.load %arg5[%c0, %c0_0] : memref<3x128xf32, #tpu.memory_space<vmem>>, vector<3x128xf32>
    %c0_1 = arith.constant 0 : index
    %c0_2 = arith.constant 0 : index
    %1 = vector.load %arg1[%c0_1, %c0_2] : memref<16x128xf32, #tpu.memory_space<vmem>>, vector<16x128xf32>
    %c0_3 = arith.constant 0 : index
    %c0_4 = arith.constant 0 : index
    %2 = vector.load %arg2[%c0_3, %c0_4] : memref<128x128xf32, #tpu.memory_space<vmem>>, vector<128x128xf32>
    %3 = vector.extract_strided_slice %0 {offsets = [0, 0], sizes = [1, 128], strides = [1, 1]} : vector<3x128xf32> to vector<1x128xf32>
    %cst = arith.constant dense<0.000000e+00> : vector<16x128xf32>
    %4 = tpu.matmul %1, %2, %cst {dimension_numbers = #tpu.dot_dimension_numbers<[1], [0], [0], [1], [0, 0, 1, 1], [], []>} : vector<16x128xf32>, vector<128x128xf32>, vector<16x128xf32> -> vector<16x128xf32>
    %5 = vector.broadcast %3 : vector<1x128xf32> to vector<16x128xf32>
    %6 = arith.addf %4, %5 : vector<16x128xf32>
    %cst_5 = arith.constant 0.000000e+00 : f32
    %7 = vector.broadcast %cst_5 : f32 to vector<16x128xf32>
    %8 = arith.maximumf %6, %7 : vector<16x128xf32>
    %c0_6 = arith.constant 0 : index
    %c0_7 = arith.constant 0 : index
    %9 = vector.load %arg3[%c0_6, %c0_7] : memref<128x128xf32, #tpu.memory_space<vmem>>, vector<128x128xf32>
    %10 = vector.extract_strided_slice %0 {offsets = [1, 0], sizes = [1, 128], strides = [1, 1]} : vector<3x128xf32> to vector<1x128xf32>
    %cst_8 = arith.constant dense<0.000000e+00> : vector<16x128xf32>
    %11 = tpu.matmul %8, %9, %cst_8 {dimension_numbers = #tpu.dot_dimension_numbers<[1], [0], [0], [1], [0, 0, 1, 1], [], []>} : vector<16x128xf32>, vector<128x128xf32>, vector<16x128xf32> -> vector<16x128xf32>
    %12 = vector.broadcast %10 : vector<1x128xf32> to vector<16x128xf32>
    %13 = arith.addf %11, %12 : vector<16x128xf32>
    %cst_9 = arith.constant 0.000000e+00 : f32
    %14 = vector.broadcast %cst_9 : f32 to vector<16x128xf32>
    %15 = arith.maximumf %13, %14 : vector<16x128xf32>
    %c0_10 = arith.constant 0 : index
    %c0_11 = arith.constant 0 : index
    %16 = vector.load %arg4[%c0_10, %c0_11] : memref<128x128xf32, #tpu.memory_space<vmem>>, vector<128x128xf32>
    %17 = vector.extract_strided_slice %0 {offsets = [2, 0], sizes = [1, 128], strides = [1, 1]} : vector<3x128xf32> to vector<1x128xf32>
    %cst_12 = arith.constant dense<0.000000e+00> : vector<16x128xf32>
    %18 = tpu.matmul %15, %16, %cst_12 {dimension_numbers = #tpu.dot_dimension_numbers<[1], [0], [0], [1], [0, 0, 1, 1], [], []>} : vector<16x128xf32>, vector<128x128xf32>, vector<16x128xf32> -> vector<16x128xf32>
    %19 = vector.broadcast %17 : vector<1x128xf32> to vector<16x128xf32>
    %20 = arith.addf %18, %19 : vector<16x128xf32>
    %c0_13 = arith.constant 0 : index
    %c0_14 = arith.constant 0 : index
    %21 = vector.load %arg6[%c0_13, %c0_14] : memref<16x128xf32, #tpu.memory_space<vmem>>, vector<16x128xf32>
    tpu.vector_store %arg6[%c0_13, %c0_14], %20 {strides = array<i32>} : memref<16x128xf32, #tpu.memory_space<vmem>>, vector<16x128xf32>,
    return
  }
  func.func @transform_0(%arg0: i32) -> (i32, i32) {
    %c0_i32 = arith.constant 0 : i32
    %c0_i32_0 = arith.constant 0 : i32
    return %arg0, %c0_i32 : i32, i32
  }
  func.func @transform_1(%arg0: i32) -> (i32, i32) {
    %c0_i32 = arith.constant 0 : i32
    %c0_i32_0 = arith.constant 0 : i32
    %c0_i32_1 = arith.constant 0 : i32
    return %c0_i32, %c0_i32_0 : i32, i32
  }
  func.func @transform_2(%arg0: i32) -> (i32, i32) {
    %c0_i32 = arith.constant 0 : i32
    %c0_i32_0 = arith.constant 0 : i32
    %c0_i32_1 = arith.constant 0 : i32
    return %c0_i32, %c0_i32_0 : i32, i32
  }
  func.func @transform_3(%arg0: i32) -> (i32, i32) {
    %c0_i32 = arith.constant 0 : i32
    %c0_i32_0 = arith.constant 0 : i32
    %c0_i32_1 = arith.constant 0 : i32
    return %c0_i32, %c0_i32_0 : i32, i32
  }
  func.func @transform_4(%arg0: i32) -> (i32, i32) {
    %c0_i32 = arith.constant 0 : i32
    %c0_i32_0 = arith.constant 0 : i32
    %c0_i32_1 = arith.constant 0 : i32
    return %c0_i32, %c0_i32_0 : i32, i32
  }
  func.func @transform_5(%arg0: i32) -> (i32, i32) {
    %c0_i32 = arith.constant 0 : i32
    %c0_i32_0 = arith.constant 0 : i32
    return %arg0, %c0_i32 : i32, i32
  }
}

</mosaic_0001>

<llo_original>
// kernel: _qnetwork_forward_impl.1
$region0: #{_qnetwork_forward_impl.1}
  #allocation0 [shape = 'u32[]', space=smem, size = 0x4, offset = 0x4, fixed_abs, tag = 'smem constant byte address 0x4 - core index']
  #allocation1 [shape = 'u32[144,128]{1,0:T(1,128)}', space=vmem, size = 0x12000, scoped, tag = 'internal scratch']
  %s0 = inlined_call_operand.vmem [shape: f32[16,128], index: 0, kind: input, shape index: {}]
  %s1 = inlined_call_operand.hbm [shape: f32[128,128], index: 1, kind: input, shape index: {}]
  %s2 = inlined_call_operand.hbm [shape: f32[128,128], index: 2, kind: input, shape index: {}]
  %s3 = inlined_call_operand.hbm [shape: f32[128,128], index: 3, kind: input, shape index: {}]
  %s4 = inlined_call_operand.vmem [shape: f32[3,128], index: 4, kind: input, shape index: {}]
  %s5 = inlined_call_operand.vmem [shape: f32[16,128], index: 5, kind: output, shape index: {}]
  %s6 = sld [smem:[#allocation0]]
  $region42: #{_qnetwork_forward_impl.1} parent=0
    _
  %s8 = ssub.s32 1, %s6
  %s9 = scalar_select 0, %s8, %s6
  $region1: #{_qnetwork_forward_impl.1} parent=0
    #allocation2 [shape = 'u8[65536]{0}', space=vmem, size = 0x10000, scoped, tag = 'input window, operand 1, single buffered']
    #allocation3 [shape = 's32[1]{0}', space=sflag, size = 0x4, scoped, tag = 'scoped memory for _qnetwork_forward_impl.1']
    #allocation4 [shape = 'u8[65536]{0}', space=vmem, size = 0x10000, scoped, tag = 'input window, operand 2, single buffered']
    #allocation5 [shape = 's32[1]{0}', space=sflag, size = 0x4, scoped, tag = 'scoped memory for _qnetwork_forward_impl.1']
    #allocation6 [shape = 'u8[65536]{0}', space=vmem, size = 0x10000, scoped, tag = 'input window, operand 3, single buffered']
    %10 = vsyncpa [#allocation3], 0
    %11 = vsyncpa [#allocation5], 0
    // Predicated region
    $region2: #{_qnetwork_forward_impl.1} parent=1 // pred_check
      _
    $region3: #{_qnetwork_forward_impl.1} parent=1 // pred_check_branch
      %13 = sbr.rel (0) target = $region5
    $region4: #{_qnetwork_forward_impl.1} parent=1 // pred_region
      _
    $region5: #{_qnetwork_forward_impl.1} parent=1 // pred_fallthru
      _
    // Predicated region
    $region6: #{_qnetwork_forward_impl.1} parent=1 // pred_check
      _
    $region7: #{_qnetwork_forward_impl.1} parent=1 // pred_check_branch
      %15 = sbr.rel (0) target = $region9
    $region8: #{_qnetwork_forward_impl.1} parent=1 // pred_region
      %s17 = ssub.s32 2048, 2048
      %18 = vsyncadd [#allocation3], %s17
      %s19 = sshll.u32 [#allocation2], 4
      %s20 = int_to_ptr.vmem [resolvable:$true] %s19
      %25 = dma.hbm_to_vmem [thread:$0]  %s1, 2048, %s20, [#allocation3], 128, 128, 8
    $region9: #{_qnetwork_forward_impl.1} parent=1 // pred_fallthru
      _
    // Predicated region
    $region10: #{_qnetwork_forward_impl.1} parent=1 // pred_check
      _
    $region11: #{_qnetwork_forward_impl.1} parent=1 // pred_check_branch
      %27 = sbr.rel (0) target = $region13
    $region12: #{_qnetwork_forward_impl.1} parent=1 // pred_region
      %s29 = ssub.s32 2048, 2048
      %30 = vsyncadd [#allocation5], %s29
      %s31 = sshll.u32 [#allocation4], 4
      %s32 = int_to_ptr.vmem [resolvable:$true] %s31
      %37 = dma.hbm_to_vmem [thread:$0]  %s2, 2048, %s32, [#allocation5], 128, 128, 8
    $region13: #{_qnetwork_forward_impl.1} parent=1 // pred_fallthru
      _
    // Predicated region
    $region14: #{_qnetwork_forward_impl.1} parent=1 // pred_check
      _
    $region15: #{_qnetwork_forward_impl.1} parent=1 // pred_check_branch
      %39 = sbr.rel (0) target = $region17
    $region16: #{_qnetwork_forward_impl.1} parent=1 // pred_region
      %s41 = ssub.s32 2048, 2048
      %42 = vsyncadd [#allocation5], %s41
      %s43 = sshll.u32 [#allocation6], 4
      %s44 = int_to_ptr.vmem [resolvable:$true] %s43
      %49 = dma.hbm_to_vmem [thread:$0]  %s3, 2048, %s44, [#allocation5], 128, 128, 8
    $region17: #{_qnetwork_forward_impl.1} parent=1 // pred_fallthru
      _
    // Predicated region
    $region18: #{_qnetwork_forward_impl.1} parent=1 // pred_check
      _
    $region19: #{_qnetwork_forward_impl.1} parent=1 // pred_check_branch
      %51 = sbr.rel (0) target = $region21
    $region20: #{_qnetwork_forward_impl.1} parent=1 // pred_region
      _
    $region21: #{_qnetwork_forward_impl.1} parent=1 // pred_fallthru
      _
    // Predicated region
    $region22: #{_qnetwork_forward_impl.1} parent=1 // pred_check
      _
    $region23: #{_qnetwork_forward_impl.1} parent=1 // pred_check_branch
      %53 = sbr.rel (0) target = $region25
    $region24: #{_qnetwork_forward_impl.1} parent=1 // pred_region
      %54 = dma.done [#allocation3], 2048
    $region25: #{_qnetwork_forward_impl.1} parent=1 // pred_fallthru
      _
    // Predicated region
    $region26: #{_qnetwork_forward_impl.1} parent=1 // pred_check
      _
    $region27: #{_qnetwork_forward_impl.1} parent=1 // pred_check_branch
      %56 = sbr.rel (0) target = $region29
    $region28: #{_qnetwork_forward_impl.1} parent=1 // pred_region
      %57 = dma.done [#allocation5], 2048
    $region29: #{_qnetwork_forward_impl.1} parent=1 // pred_fallthru
      _
    // Predicated region
    $region30: #{_qnetwork_forward_impl.1} parent=1 // pred_check
      _
    $region31: #{_qnetwork_forward_impl.1} parent=1 // pred_check_branch
      %59 = sbr.rel (0) target = $region33
    $region32: #{_qnetwork_forward_impl.1} parent=1 // pred_region
      %60 = dma.done [#allocation5], 2048
    $region33: #{_qnetwork_forward_impl.1} parent=1 // pred_fallthru
      _
    %v61 = vld [vmem:[%s4] sm:$0x7]
    %v62 = vld [vmem:[%s0] sm:$0xff]
    %v63 = vld [vmem:[%s0 + $0x8] sm:$0xff]
    %v64 = vld [vmem:[#allocation2] sm:$0xff]
    %v65 = vld [vmem:[#allocation2 + $0x8] sm:$0xff]
    %v66 = vld [vmem:[#allocation2 + $0x10] sm:$0xff]
    %v67 = vld [vmem:[#allocation2 + $0x18] sm:$0xff]
    %v68 = vld [vmem:[#allocation2 + $0x20] sm:$0xff]
    %v69 = vld [vmem:[#allocation2 + $0x28] sm:$0xff]
    %v70 = vld [vmem:[#allocation2 + $0x30] sm:$0xff]
    %v71 = vld [vmem:[#allocation2 + $0x38] sm:$0xff]
    %v72 = vld [vmem:[#allocation2 + $0x40] sm:$0xff]
    %v73 = vld [vmem:[#allocation2 + $0x48] sm:$0xff]
    %v74 = vld [vmem:[#allocation2 + $0x50] sm:$0xff]
    %v75 = vld [vmem:[#allocation2 + $0x58] sm:$0xff]
    %v76 = vld [vmem:[#allocation2 + $0x60] sm:$0xff]
    %v77 = vld [vmem:[#allocation2 + $0x68] sm:$0xff]
    %v78 = vld [vmem:[#allocation2 + $0x70] sm:$0xff]
    %v79 = vld [vmem:[#allocation2 + $0x78] sm:$0xff]
    %v80 = vlaneseq
    %v81 = vshrl.u32 %v80, 7
    %v82 = vsub.s32 0, %v81
    %v83 = vrot.slane %v61, %v82
    %84 = vmatprep.subr.mxu0 0.0
    %85 = vmatpush1.msra.mxu0 %v64
    %86 = vmatprep.subr.mxu0 0.0
    %87 = vmatpush1.msra.mxu0 %v65
    %88 = vmatprep.subr.mxu0 0.0
    %89 = vmatpush1.msra.mxu0 %v66
    %90 = vmatprep.subr.mxu0 0.0
    %91 = vmatpush1.msra.mxu0 %v67
    %92 = vmatprep.subr.mxu0 0.0
    %93 = vmatpush1.msra.mxu0 %v68
    %94 = vmatprep.subr.mxu0 0.0
    %95 = vmatpush1.msra.mxu0 %v69
    %96 = vmatprep.subr.mxu0 0.0
    %97 = vmatpush1.msra.mxu0 %v70
    %98 = vmatprep.subr.mxu0 0.0
    %99 = vmatpush1.msra.mxu0 %v71
    %100 = vmatprep.subr.mxu0 0.0
    %101 = vmatpush1.msra.mxu0 %v72
    %102 = vmatprep.subr.mxu0 0.0
    %103 = vmatpush1.msra.mxu0 %v73
    %104 = vmatprep.subr.mxu0 0.0
    %105 = vmatpush1.msra.mxu0 %v74
    %106 = vmatprep.subr.mxu0 0.0
    %107 = vmatpush1.msra.mxu0 %v75
    %108 = vmatprep.subr.mxu0 0.0
    %109 = vmatpush1.msra.mxu0 %v76
    %110 = vmatprep.subr.mxu0 0.0
    %111 = vmatpush1.msra.mxu0 %v77
    %112 = vmatprep.subr.mxu0 0.0
    %113 = vmatpush1.msra.mxu0 %v78
    %114 = vmatprep.subr.mxu0 0.0
    %115 = vmatpush1.msra.mxu0 %v79
    %116 = vmatprep.subr.mxu0 0.0
    %117 = vmatpush1.msra.mxu0 0.0
    %118 = vmatprep.subr.mxu0 0.0
    %119 = vmatpush1.msra.mxu0 0.0
    %120 = vmatprep.subr.mxu0 0.0
    %121 = vmatpush1.msra.mxu0 0.0
    %122 = vmatprep.subr.mxu0 0.0
    %123 = vmatpush1.msra.mxu0 0.0
    %124 = vmatprep.subr.mxu0 0.0
    %125 = vmatpush1.msra.mxu0 0.0
    %126 = vmatprep.subr.mxu0 0.0
    %127 = vmatpush1.msra.mxu0 0.0
    %128 = vmatprep.subr.mxu0 0.0
    %129 = vmatpush1.msra.mxu0 0.0
    %130 = vmatprep.subr.mxu0 0.0
    %131 = vmatpush1.msra.mxu0 0.0
    %132 = vmatprep.subr.mxu0 0.0
    %133 = vmatpush1.msra.mxu0 0.0
    %134 = vmatprep.subr.mxu0 0.0
    %135 = vmatpush1.msra.mxu0 0.0
    %136 = vmatprep.subr.mxu0 0.0
    %137 = vmatpush1.msra.mxu0 0.0
    %138 = vmatprep.subr.mxu0 0.0
    %139 = vmatpush1.msra.mxu0 0.0
    %140 = vmatprep.subr.mxu0 0.0
    %141 = vmatpush1.msra.mxu0 0.0
    %142 = vmatprep.subr.mxu0 0.0
    %143 = vmatpush1.msra.mxu0 0.0
    %144 = vmatprep.subr.mxu0 0.0
    %145 = vmatpush1.msra.mxu0 0.0
    %146 = vmatprep.subr.mxu0 0.0
    %147 = vmatpush1.msra.mxu0 0.0
    %148 = vmatprep.mubr.f32.mxu0 0.0
    %149 = vmatmul.mubr.f32.gmra.mrb[0].mxu0 %v62
    %v150 = vpop.f32.mrb[0].mxu0
    %v151 = vadd.f32 %v83, %v150
    %v152 = vpop.f32.mrb[0].mxu0
    %153 = vmatprep.mubr.f32.mxu0 0.0
    %154 = vmatmul.mubr.f32.gmra.mrb[0].mxu0 %v63
    %v155 = vpop.f32.mrb[0].mxu0
    %v156 = vadd.f32 %v83, %v155
    %v157 = vpop.f32.mrb[0].mxu0
    %158 = vdwg.mxu0
    %v159 = vmax.f32 %v151, 0.0
    %v160 = vmax.f32 %v156, 0.0
    %v161 = vld [vmem:[#allocation4] sm:$0xff]
    %v162 = vld [vmem:[#allocation4 + $0x8] sm:$0xff]
    %v163 = vld [vmem:[#allocation4 + $0x10] sm:$0xff]
    %v164 = vld [vmem:[#allocation4 + $0x18] sm:$0xff]
    %v165 = vld [vmem:[#allocation4 + $0x20] sm:$0xff]
    %v166 = vld [vmem:[#allocation4 + $0x28] sm:$0xff]
    %v167 = vld [vmem:[#allocation4 + $0x30] sm:$0xff]
    %v168 = vld [vmem:[#allocation4 + $0x38] sm:$0xff]
    %v169 = vld [vmem:[#allocation4 + $0x40] sm:$0xff]
    %v170 = vld [vmem:[#allocation4 + $0x48] sm:$0xff]
    %v171 = vld [vmem:[#allocation4 + $0x50] sm:$0xff]
    %v172 = vld [vmem:[#allocation4 + $0x58] sm:$0xff]
    %v173 = vld [vmem:[#allocation4 + $0x60] sm:$0xff]
    %v174 = vld [vmem:[#allocation4 + $0x68] sm:$0xff]
    %v175 = vld [vmem:[#allocation4 + $0x70] sm:$0xff]
    %v176 = vld [vmem:[#allocation4 + $0x78] sm:$0xff]
    %v177 = vlaneseq
    %v178 = vshrl.u32 %v177, 7
    %v179 = vsub.s32 1, %v178
    %v180 = vrot.slane %v61, %v179
    %181 = vmatprep.subr.mxu0 0.0
    %182 = vmatpush1.msra.mxu0 %v161
    %183 = vmatprep.subr.mxu0 0.0
    %184 = vmatpush1.msra.mxu0 %v162
    %185 = vmatprep.subr.mxu0 0.0
    %186 = vmatpush1.msra.mxu0 %v163
    %187 = vmatprep.subr.mxu0 0.0
    %188 = vmatpush1.msra.mxu0 %v164
    %189 = vmatprep.subr.mxu0 0.0
    %190 = vmatpush1.msra.mxu0 %v165
    %191 = vmatprep.subr.mxu0 0.0
    %192 = vmatpush1.msra.mxu0 %v166
    %193 = vmatprep.subr.mxu0 0.0
    %194 = vmatpush1.msra.mxu0 %v167
    %195 = vmatprep.subr.mxu0 0.0
    %196 = vmatpush1.msra.mxu0 %v168
    %197 = vmatprep.subr.mxu0 0.0
    %198 = vmatpush1.msra.mxu0 %v169
    %199 = vmatprep.subr.mxu0 0.0
    %200 = vmatpush1.msra.mxu0 %v170
    %201 = vmatprep.subr.mxu0 0.0
    %202 = vmatpush1.msra.mxu0 %v171
    %203 = vmatprep.subr.mxu0 0.0
    %204 = vmatpush1.msra.mxu0 %v172
    %205 = vmatprep.subr.mxu0 0.0
    %206 = vmatpush1.msra.mxu0 %v173
    %207 = vmatprep.subr.mxu0 0.0
    %208 = vmatpush1.msra.mxu0 %v174
    %209 = vmatprep.subr.mxu0 0.0
    %210 = vmatpush1.msra.mxu0 %v175
    %211 = vmatprep.subr.mxu0 0.0
    %212 = vmatpush1.msra.mxu0 %v176
    %213 = vmatprep.subr.mxu0 0.0
    %214 = vmatpush1.msra.mxu0 0.0
    %215 = vmatprep.subr.mxu0 0.0
    %216 = vmatpush1.msra.mxu0 0.0
    %217 = vmatprep.subr.mxu0 0.0
    %218 = vmatpush1.msra.mxu0 0.0
    %219 = vmatprep.subr.mxu0 0.0
    %220 = vmatpush1.msra.mxu0 0.0
    %221 = vmatprep.subr.mxu0 0.0
    %222 = vmatpush1.msra.mxu0 0.0
    %223 = vmatprep.subr.mxu0 0.0
    %224 = vmatpush1.msra.mxu0 0.0
    %225 = vmatprep.subr.mxu0 0.0
    %226 = vmatpush1.msra.mxu0 0.0
    %227 = vmatprep.subr.mxu0 0.0
    %228 = vmatpush1.msra.mxu0 0.0
    %229 = vmatprep.subr.mxu0 0.0
    %230 = vmatpush1.msra.mxu0 0.0
    %231 = vmatprep.subr.mxu0 0.0
    %232 = vmatpush1.msra.mxu0 0.0
    %233 = vmatprep.subr.mxu0 0.0
    %234 = vmatpush1.msra.mxu0 0.0
    %235 = vmatprep.subr.mxu0 0.0
    %236 = vmatpush1.msra.mxu0 0.0
    %237 = vmatprep.subr.mxu0 0.0
    %238 = vmatpush1.msra.mxu0 0.0
    %239 = vmatprep.subr.mxu0 0.0
    %240 = vmatpush1.msra.mxu0 0.0
    %241 = vmatprep.subr.mxu0 0.0
    %242 = vmatpush1.msra.mxu0 0.0
    %243 = vmatprep.subr.mxu0 0.0
    %244 = vmatpush1.msra.mxu0 0.0
    %245 = vmatprep.mubr.f32.mxu0 0.0
    %246 = vmatmul.mubr.f32.gmra.mrb[0].mxu0 %v159
    %v247 = vpop.f32.mrb[0].mxu0
    %v248 = vadd.f32 %v180, %v247
    %v249 = vpop.f32.mrb[0].mxu0
    %250 = vmatprep.mubr.f32.mxu0 0.0
    %251 = vmatmul.mubr.f32.gmra.mrb[0].mxu0 %v160
    %v252 = vpop.f32.mrb[0].mxu0
    %v253 = vadd.f32 %v180, %v252
    %v254 = vpop.f32.mrb[0].mxu0
    %255 = vdwg.mxu0
    %v256 = vmax.f32 %v248, 0.0
    %v257 = vmax.f32 %v253, 0.0
    %v258 = vld [vmem:[#allocation6] sm:$0xff]
    %v259 = vld [vmem:[#allocation6 + $0x8] sm:$0xff]
    %v260 = vld [vmem:[#allocation6 + $0x10] sm:$0xff]
    %v261 = vld [vmem:[#allocation6 + $0x18] sm:$0xff]
    %v262 = vld [vmem:[#allocation6 + $0x20] sm:$0xff]
    %v263 = vld [vmem:[#allocation6 + $0x28] sm:$0xff]
    %v264 = vld [vmem:[#allocation6 + $0x30] sm:$0xff]
    %v265 = vld [vmem:[#allocation6 + $0x38] sm:$0xff]
    %v266 = vld [vmem:[#allocation6 + $0x40] sm:$0xff]
    %v267 = vld [vmem:[#allocation6 + $0x48] sm:$0xff]
    %v268 = vld [vmem:[#allocation6 + $0x50] sm:$0xff]
    %v269 = vld [vmem:[#allocation6 + $0x58] sm:$0xff]
    %v270 = vld [vmem:[#allocation6 + $0x60] sm:$0xff]
    %v271 = vld [vmem:[#allocation6 + $0x68] sm:$0xff]
    %v272 = vld [vmem:[#allocation6 + $0x70] sm:$0xff]
    %v273 = vld [vmem:[#allocation6 + $0x78] sm:$0xff]
    %v274 = vlaneseq
    %v275 = vshrl.u32 %v274, 7
    %v276 = vsub.s32 2, %v275
    %v277 = vrot.slane %v61, %v276
    %278 = vmatprep.subr.mxu0 0.0
    %279 = vmatpush1.msra.mxu0 %v258
    %280 = vmatprep.subr.mxu0 0.0
    %281 = vmatpush1.msra.mxu0 %v259
    %282 = vmatprep.subr.mxu0 0.0
    %283 = vmatpush1.msra.mxu0 %v260
    %284 = vmatprep.subr.mxu0 0.0
    %285 = vmatpush1.msra.mxu0 %v261
    %286 = vmatprep.subr.mxu0 0.0
    %287 = vmatpush1.msra.mxu0 %v262
    %288 = vmatprep.subr.mxu0 0.0
    %289 = vmatpush1.msra.mxu0 %v263
    %290 = vmatprep.subr.mxu0 0.0
    %291 = vmatpush1.msra.mxu0 %v264
    %292 = vmatprep.subr.mxu0 0.0
    %293 = vmatpush1.msra.mxu0 %v265
    %294 = vmatprep.subr.mxu0 0.0
    %295 = vmatpush1.msra.mxu0 %v266
    %296 = vmatprep.subr.mxu0 0.0
    %297 = vmatpush1.msra.mxu0 %v267
    %298 = vmatprep.subr.mxu0 0.0
    %299 = vmatpush1.msra.mxu0 %v268
    %300 = vmatprep.subr.mxu0 0.0
    %301 = vmatpush1.msra.mxu0 %v269
    %302 = vmatprep.subr.mxu0 0.0
    %303 = vmatpush1.msra.mxu0 %v270
    %304 = vmatprep.subr.mxu0 0.0
    %305 = vmatpush1.msra.mxu0 %v271
    %306 = vmatprep.subr.mxu0 0.0
    %307 = vmatpush1.msra.mxu0 %v272
    %308 = vmatprep.subr.mxu0 0.0
    %309 = vmatpush1.msra.mxu0 %v273
    %310 = vmatprep.subr.mxu0 0.0
    %311 = vmatpush1.msra.mxu0 0.0
    %312 = vmatprep.subr.mxu0 0.0
    %313 = vmatpush1.msra.mxu0 0.0
    %314 = vmatprep.subr.mxu0 0.0
    %315 = vmatpush1.msra.mxu0 0.0
    %316 = vmatprep.subr.mxu0 0.0
    %317 = vmatpush1.msra.mxu0 0.0
    %318 = vmatprep.subr.mxu0 0.0
    %319 = vmatpush1.msra.mxu0 0.0
    %320 = vmatprep.subr.mxu0 0.0
    %321 = vmatpush1.msra.mxu0 0.0
    %322 = vmatprep.subr.mxu0 0.0
    %323 = vmatpush1.msra.mxu0 0.0
    %324 = vmatprep.subr.mxu0 0.0
    %325 = vmatpush1.msra.mxu0 0.0
    %326 = vmatprep.subr.mxu0 0.0
    %327 = vmatpush1.msra.mxu0 0.0
    %328 = vmatprep.subr.mxu0 0.0
    %329 = vmatpush1.msra.mxu0 0.0
    %330 = vmatprep.subr.mxu0 0.0
    %331 = vmatpush1.msra.mxu0 0.0
    %332 = vmatprep.subr.mxu0 0.0
    %333 = vmatpush1.msra.mxu0 0.0
    %334 = vmatprep.subr.mxu0 0.0
    %335 = vmatpush1.msra.mxu0 0.0
    %336 = vmatprep.subr.mxu0 0.0
    %337 = vmatpush1.msra.mxu0 0.0
    %338 = vmatprep.subr.mxu0 0.0
    %339 = vmatpush1.msra.mxu0 0.0
    %340 = vmatprep.subr.mxu0 0.0
    %341 = vmatpush1.msra.mxu0 0.0
    %342 = vmatprep.mubr.f32.mxu0 0.0
    %343 = vmatmul.mubr.f32.gmra.mrb[0].mxu0 %v256
    %v344 = vpop.f32.mrb[0].mxu0
    %v345 = vadd.f32 %v277, %v344
    %v346 = vpop.f32.mrb[0].mxu0
    %347 = vmatprep.mubr.f32.mxu0 0.0
    %348 = vmatmul.mubr.f32.gmra.mrb[0].mxu0 %v257
    %v349 = vpop.f32.mrb[0].mxu0
    %v350 = vadd.f32 %v277, %v349
    %v351 = vpop.f32.mrb[0].mxu0
    %352 = vdwg.mxu0
    %353 = vst [vmem:[%s5] sm:$0xff] %v345
    %354 = vst [vmem:[%s5 + $0x8] sm:$0xff] %v350
    // Predicated region
    $region34: #{_qnetwork_forward_impl.1} parent=1 // pred_check
      _
    $region35: #{_qnetwork_forward_impl.1} parent=1 // pred_check_branch
      %356 = sbr.rel (0) target = $region37
    $region36: #{_qnetwork_forward_impl.1} parent=1 // pred_region
      _
    $region37: #{_qnetwork_forward_impl.1} parent=1 // pred_fallthru
      _
    // Predicated region
    $region38: #{_qnetwork_forward_impl.1} parent=1 // pred_check
      _
    $region39: #{_qnetwork_forward_impl.1} parent=1 // pred_check_branch
      %358 = sbr.rel (0) target = $region41
    $region40: #{_qnetwork_forward_impl.1} parent=1 // pred_region
      _
    $region41: #{_qnetwork_forward_impl.1} parent=1 // pred_fallthru
      _
    %359 = vsyncpa [#allocation3], 1
    %360 = vsyncpa [#allocation5], 1

</llo_original>
